<compile_context>
chip_gen: v7x
topology: tpu7x:2x2x1
jax: 0.10.0
libtpu: 0.0.40
codegen_flags: <defaults>
</compile_context>

<pallas_src>
import functools
import math

import jax
import jax.numpy as jnp
from jax.experimental import pallas as pl
from jax.experimental.pallas import tpu as pltpu


# ---------------------------------------------------------------------------
# Generation-aware limits & tiling helpers
# ---------------------------------------------------------------------------
def _detect_vmem_limit():
    """~75% of physical VMEM: ~48 MiB on v7x (64 MiB/TC), ~96-100 MiB on
    v5e/v6e (128 MiB).  Falls back to 48 MiB if the query is unavailable."""
    try:
        cap = int(pltpu.get_tpu_info().vmem_capacity_bytes)
    except Exception:
        cap = 64 * 1024 * 1024
    return int(max(16 * 1024 * 1024, min(cap * 3 // 4, 100 * 1024 * 1024)))


_VMEM_LIMIT = _detect_vmem_limit()


def _cparams(dims):
    return pltpu.CompilerParams(dimension_semantics=dims,
                                vmem_limit_bytes=_VMEM_LIMIT)


def _round_up(n, m):
    return ((n + m - 1) // m) * m


def _row_plan(n, f):
    """Row-tiling plan -> (tile, padded_rows).

    Rows are padded up to a multiple of the tile so a non-divisible N never
    degenerates into one huge block.  Tiles aim for >= 2 blocks (keeps both
    v7x TensorCores fed) and are capped so the f32 accumulator block stays
    within ~4 MiB, while staying large to amortize per-step pipeline overhead.
    """
    n8 = _round_up(max(n, 1), 8)
    cap = max(8, min(1024, ((4 << 20) // (4 * max(f, 1))) // 8 * 8))
    if n8 <= 8:
        return 8, 8
    tile = min(cap, max(8, _round_up(n8 // 2, 8)))
    return tile, _round_up(n8, tile)


def _k_plan(k, f):
    """Contraction tiling: keep the full (K, F) weight resident unless it is
    large (v7x has only 64 MiB VMEM per TC); then carve K into MXU-friendly
    chunks accumulated in a f32 VMEM scratch."""
    if k * f * 2 <= (8 << 20):
        return k
    for t in (2048, 1024, 512, 256):
        if k % t == 0:
            return t
    return k  # TODO(synk): pad K for large non-divisible contraction dims.


def _seq_tile(length):
    for t in (512, 256, 128, 64, 32, 16, 8):
        if length % t == 0:
            return t
    return length  # TODO(synk): pad/mask ragged sequence lengths.


def _apply_act(y, activation):
    if activation == "relu":
        return jnp.maximum(y, 0.0)
    if activation == "gelu":
        return jax.nn.gelu(y)
    return y


# ---------------------------------------------------------------------------
# Linear kernels (plain, and fused residual + LayerNorm epilogue)
# ---------------------------------------------------------------------------
def _linear_kernel(x_ref, w_ref, b_ref, o_ref, acc_ref, *, activation):
    k = pl.program_id(1)

    @pl.when(k == 0)
    def _():
        acc_ref[...] = jnp.zeros_like(acc_ref)

    acc_ref[...] += jnp.dot(x_ref[...], w_ref[...],
                            preferred_element_type=jnp.float32)

    @pl.when(k == pl.num_programs(1) - 1)
    def _():
        y = _apply_act(acc_ref[...] + b_ref[...], activation)
        o_ref[...] = y.astype(o_ref.dtype)


def _linear_res_ln_kernel(x_ref, w_ref, b_ref, res_ref, g_ref, beta_ref,
                          o_ref, acc_ref, *, activation, eps):
    k = pl.program_id(1)

    @pl.when(k == 0)
    def _():
        acc_ref[...] = jnp.zeros_like(acc_ref)

    acc_ref[...] += jnp.dot(x_ref[...], w_ref[...],
                            preferred_element_type=jnp.float32)

    @pl.when(k == pl.num_programs(1) - 1)
    def _():
        y = _apply_act(acc_ref[...] + b_ref[...], activation)
        z = res_ref[...].astype(jnp.float32) + y            # residual add, f32
        mean = jnp.mean(z, axis=-1, keepdims=True)
        var = jnp.mean((z - mean) ** 2, axis=-1, keepdims=True)
        zn = (z - mean) * jax.lax.rsqrt(var + eps)
        o_ref[...] = (zn * g_ref[...] + beta_ref[...]).astype(o_ref.dtype)


def linear(x, w, b, activation=None, residual=None, ln=None,
           out_dtype=jnp.bfloat16):
    """y = act(x @ w + b); if residual/ln given: out = LayerNorm(residual + y)."""
    orig_shape = x.shape
    K = orig_shape[-1]
    N = math.prod(orig_shape[:-1])
    F = w.shape[1]
    tile, n_pad = _row_plan(N, F)
    tk = _k_plan(K, F)
    nk = K // tk
    grid = (n_pad // tile, nk)

    x2 = x.reshape(N, K).astype(jnp.bfloat16)
    if n_pad != N:
        x2 = jnp.pad(x2, ((0, n_pad - N), (0, 0)))
    w2 = w.astype(jnp.bfloat16)
    b2 = b.reshape(1, F).astype(jnp.float32)

    x_spec = pl.BlockSpec((tile, tk), lambda i, k: (i, k))
    w_spec = pl.BlockSpec((tk, F), lambda i, k: (k, 0))     # (near-)resident
    v_spec = pl.BlockSpec((1, F), lambda i, k: (0, 0))      # resident vectors
    o_spec = pl.BlockSpec((tile, F), lambda i, k: (i, 0))
    scratch = [pltpu.VMEM((tile, F), jnp.float32)]

    flops = 2 * n_pad * K * F
    transcendentals = n_pad * F if activation == "gelu" else 0
    bytes_accessed = n_pad * K * 2 + K * F * 2 + n_pad * F * 2 + F * 4

    if residual is None:
        out = pl.pallas_call(
            functools.partial(_linear_kernel, activation=activation),
            out_shape=jax.ShapeDtypeStruct((n_pad, F), out_dtype),
            grid=grid,
            in_specs=[x_spec, w_spec, v_spec],
            out_specs=o_spec,
            scratch_shapes=scratch,
            compiler_params=_cparams(("parallel", "arbitrary")),
            cost_estimate=pl.CostEstimate(
                flops=flops, transcendentals=transcendentals,
                bytes_accessed=bytes_accessed),
        )(x2, w2, b2)
    else:
        g, beta = ln
        r2 = residual.reshape(N, F).astype(jnp.bfloat16)
        if n_pad != N:
            r2 = jnp.pad(r2, ((0, n_pad - N), (0, 0)))
        out = pl.pallas_call(
            functools.partial(_linear_res_ln_kernel, activation=activation,
                              eps=1e-5),
            out_shape=jax.ShapeDtypeStruct((n_pad, F), out_dtype),
            grid=grid,
            in_specs=[x_spec, w_spec, v_spec,
                      pl.BlockSpec((tile, F), lambda i, k: (i, 0)),
                      v_spec, v_spec],
            out_specs=o_spec,
            scratch_shapes=scratch,
            compiler_params=_cparams(("parallel", "arbitrary")),
            cost_estimate=pl.CostEstimate(
                flops=flops + 10 * n_pad * F,
                transcendentals=transcendentals,
                bytes_accessed=bytes_accessed + n_pad * F * 2),
        )(x2, w2, b2, r2, g.reshape(1, F).astype(jnp.float32),
          beta.reshape(1, F).astype(jnp.float32))
    return out[:N].reshape(*orig_shape[:-1], F)


# ---------------------------------------------------------------------------
# Fused (projection + flash attention) kernel
#   grid = (B, H, Lk // tk); per-head weights delivered head-major via
#   BlockSpec; online softmax over KV tiles with f32 VMEM accumulators.
# ---------------------------------------------------------------------------
def _flash_attn_kernel(xq_ref, xkv_ref, wq_ref, bq_ref, wk_ref, bk_ref,
                       wv_ref, bv_ref, o_ref, q_sc, m_sc, l_sc, acc_sc,
                       *, causal, scale, kv_tile):
    kv = pl.program_id(2)

    @pl.when(kv == 0)
    def _():
        q = jnp.dot(xq_ref[0], wq_ref[0], preferred_element_type=jnp.float32)
        q_sc[...] = ((q + bq_ref[0]) * scale).astype(q_sc.dtype)
        m_sc[...] = jnp.full_like(m_sc, -jnp.inf)
        l_sc[...] = jnp.zeros_like(l_sc)
        acc_sc[...] = jnp.zeros_like(acc_sc)

    xkv = xkv_ref[0]                                           # (tk, dm) bf16
    k = jnp.dot(xkv, wk_ref[0], preferred_element_type=jnp.float32) + bk_ref[0]
    v = jnp.dot(xkv, wv_ref[0], preferred_element_type=jnp.float32) + bv_ref[0]

    # s = q @ k^T  (contract the head dim of both operands)
    s = jax.lax.dot_general(q_sc[...], k.astype(jnp.bfloat16),
                            (((1,), (1,)), ((), ())),
                            preferred_element_type=jnp.float32)  # (Lq, tk)
    if causal:
        lq = q_sc.shape[0]
        row = jax.lax.broadcasted_iota(jnp.int32, (lq, kv_tile), 0)
        col = jax.lax.broadcasted_iota(jnp.int32, (lq, kv_tile), 1) + kv * kv_tile
        s = jnp.where(col <= row, s, jnp.float32(-1e30))

    m_new = jnp.maximum(m_sc[...], jnp.max(s, axis=-1, keepdims=True))
    alpha = jnp.exp(m_sc[...] - m_new)
    p = jnp.exp(s - m_new)
    l_sc[...] = alpha * l_sc[...] + jnp.sum(p, axis=-1, keepdims=True)
    acc_sc[...] = alpha * acc_sc[...] + jnp.dot(
        p.astype(jnp.bfloat16), v.astype(jnp.bfloat16),
        preferred_element_type=jnp.float32)
    m_sc[...] = m_new

    @pl.when(kv == pl.num_programs(2) - 1)
    def _():
        o_ref[0, 0] = (acc_sc[...] *
                       pl.reciprocal(l_sc[...], approx=True)).astype(o_ref.dtype)


def flash_attention(xq, xkv, p, n_heads, causal):
    """Fused per-head QKV projection + flash attention.

    xq: (B, Lq, dm) query source, xkv: (B, Lk, dm) key/value source.
    p:  per-head weights wq/wk/wv (H, dm, E) and biases bq/bk/bv (H, 1, E).
    Returns per-head outputs (B, H, Lq, E) in bf16.
    """
    B, Lq, dm = xq.shape
    Lk = xkv.shape[1]
    H = n_heads
    E = dm // H
    tk = _seq_tile(Lk)
    nkv = Lk // tk
    scale = 1.0 / math.sqrt(E)

    wspec = pl.BlockSpec((1, dm, E), lambda b, h, kv: (h, 0, 0))
    bspec = pl.BlockSpec((1, 1, E), lambda b, h, kv: (h, 0, 0))

    return pl.pallas_call(
        functools.partial(_flash_attn_kernel, causal=causal, scale=scale,
                          kv_tile=tk),
        out_shape=jax.ShapeDtypeStruct((B, H, Lq, E), jnp.bfloat16),
        grid=(B, H, nkv),
        in_specs=[
            pl.BlockSpec((1, Lq, dm), lambda b, h, kv: (b, 0, 0)),
            pl.BlockSpec((1, tk, dm), lambda b, h, kv: (b, kv, 0)),
            wspec, bspec, wspec, bspec, wspec, bspec,
        ],
        out_specs=pl.BlockSpec((1, 1, Lq, E), lambda b, h, kv: (b, h, 0, 0)),
        scratch_shapes=[
            pltpu.VMEM((Lq, E), jnp.bfloat16),   # q (scaled)
            pltpu.VMEM((Lq, 1), jnp.float32),    # running max
            pltpu.VMEM((Lq, 1), jnp.float32),    # running denom
            pltpu.VMEM((Lq, E), jnp.float32),    # output accumulator
        ],
        compiler_params=_cparams(("parallel", "parallel", "arbitrary")),
    )(xq.astype(jnp.bfloat16), xkv.astype(jnp.bfloat16),
      p["wq"].astype(jnp.bfloat16), p["bq"],
      p["wk"].astype(jnp.bfloat16), p["bk"],
      p["wv"].astype(jnp.bfloat16), p["bv"])


# ---------------------------------------------------------------------------
# Attention out-projection (accumulated over heads) + residual + LayerNorm
# ---------------------------------------------------------------------------
def _attn_out_kernel(o_ref, wo_ref, bo_ref, res_ref, g_ref, beta_ref,
                     out_ref, acc_ref, *, eps):
    h = pl.program_id(1)

    @pl.when(h == 0)
    def _():
        acc_ref[...] = jnp.zeros_like(acc_ref)

    acc_ref[...] += jnp.dot(o_ref[0, 0], wo_ref[0],
                            preferred_element_type=jnp.float32)

    @pl.when(h == pl.num_programs(1) - 1)
    def _():
        z = res_ref[0].astype(jnp.float32) + acc_ref[...] + bo_ref[...]
        mean = jnp.mean(z, axis=-1, keepdims=True)
        var = jnp.mean((z - mean) ** 2, axis=-1, keepdims=True)
        zn = (z - mean) * jax.lax.rsqrt(var + eps)
        out_ref[0] = (zn * g_ref[...] + beta_ref[...]).astype(out_ref.dtype)


def attn_out_ln(o_heads, res, wo3, bo, g, beta, out_dtype=jnp.bfloat16):
    """out = LayerNorm(res + concat_heads(o) @ Wo + bo); heads on an
    'arbitrary' grid axis with Wo stored as (H, E, dm)."""
    B, H, Lq, E = o_heads.shape
    dm = wo3.shape[2]
    return pl.pallas_call(
        functools.partial(_attn_out_kernel, eps=1e-5),
        out_shape=jax.ShapeDtypeStruct((B, Lq, dm), out_dtype),
        grid=(B, H),
        in_specs=[
            pl.BlockSpec((1, 1, Lq, E), lambda b, h: (b, h, 0, 0)),
            pl.BlockSpec((1, E, dm), lambda b, h: (h, 0, 0)),
            pl.BlockSpec((1, dm), lambda b, h: (0, 0)),
            pl.BlockSpec((1, Lq, dm), lambda b, h: (b, 0, 0)),
            pl.BlockSpec((1, dm), lambda b, h: (0, 0)),
            pl.BlockSpec((1, dm), lambda b, h: (0, 0)),
        ],
        out_specs=pl.BlockSpec((1, Lq, dm), lambda b, h: (b, 0, 0)),
        scratch_shapes=[pltpu.VMEM((Lq, dm), jnp.float32)],
        compiler_params=_cparams(("parallel", "arbitrary")),
    )(o_heads, wo3.astype(jnp.bfloat16),
      bo.reshape(1, dm).astype(jnp.float32), res.astype(jnp.bfloat16),
      g.reshape(1, dm).astype(jnp.float32),
      beta.reshape(1, dm).astype(jnp.float32))


# ---------------------------------------------------------------------------
# Date2Vec-Fourier embedding + sum(-1) + residual add + d_model projection
# (fully fused; group-sum folded into the projection weight)
# ---------------------------------------------------------------------------
def _d2v_proj_kernel(t_ref, x_ref, w_ref, b_ref, sel_ref, fw_ref, pw_ref,
                     pb_ref, o_ref):
    proj = jnp.dot(t_ref[...], w_ref[...],
                   preferred_element_type=jnp.float32) + b_ref[...]
    sel = sel_ref[...]
    vals = sel * proj + (1.0 - sel) * jnp.sin(proj)
    out = jnp.dot(vals.astype(jnp.bfloat16), fw_ref[...],
                  preferred_element_type=jnp.float32)
    out = out + jnp.dot(x_ref[...], pw_ref[...],
                        preferred_element_type=jnp.float32)
    o_ref[...] = (out + pb_ref[...]).astype(o_ref.dtype)


def d2v_fourier_proj(x_enc, marks, p, proj_w, proj_b):
    # TODO(synk): Date2Vec_Fourier source is unavailable; a Time2Vec-style
    # sin-Fourier embedding is synthesized and the 'norm'/'denorm' bookkeeping
    # of the original module is not reproduced.
    B, L, D = x_enc.shape
    N = B * L
    M = marks.shape[-1]
    DK = p["w"].shape[1]
    dm = proj_w.shape[1]
    tile, n_pad = _row_plan(N, dm)

    t2 = marks.reshape(N, M).astype(jnp.bfloat16)
    x2 = x_enc.reshape(N, D).astype(jnp.bfloat16)
    if n_pad != N:
        t2 = jnp.pad(t2, ((0, n_pad - N), (0, 0)))
        x2 = jnp.pad(x2, ((0, n_pad - N), (0, 0)))

    # Fold the group-sum (sum over the K Fourier components of each feature)
    # into the d_feature -> d_model projection:  (vals@gsum)@Wp == vals@(gsum@Wp)
    fused_w = (p["gsum"] @ proj_w).astype(jnp.bfloat16)          # (DK, dm)

    out = pl.pallas_call(
        _d2v_proj_kernel,
        out_shape=jax.ShapeDtypeStruct((n_pad, dm), jnp.bfloat16),
        grid=(n_pad // tile,),
        in_specs=[
            pl.BlockSpec((tile, M), lambda i: (i, 0)),
            pl.BlockSpec((tile, D), lambda i: (i, 0)),
            pl.BlockSpec((M, DK), lambda i: (0, 0)),     # constants resident
            pl.BlockSpec((1, DK), lambda i: (0, 0)),
            pl.BlockSpec((1, DK), lambda i: (0, 0)),
            pl.BlockSpec((DK, dm), lambda i: (0, 0)),
            pl.BlockSpec((D, dm), lambda i: (0, 0)),
            pl.BlockSpec((1, dm), lambda i: (0, 0)),
        ],
        out_specs=pl.BlockSpec((tile, dm), lambda i: (i, 0)),
        compiler_params=_cparams(("parallel",)),
    )(t2, x2, p["w"].astype(jnp.bfloat16), p["b"].reshape(1, DK),
      p["sel"], fused_w, proj_w.astype(jnp.bfloat16),
      proj_b.reshape(1, dm).astype(jnp.float32))
    return out[:N].reshape(B, L, dm)


# ---------------------------------------------------------------------------
# Final time projection over L: out[b] = Wt @ y[b] + bt  (seq_len -> pred_len)
# ---------------------------------------------------------------------------
def _time_proj_kernel(y_ref, wt_ref, bt_ref, o_ref):
    o = jnp.dot(wt_ref[...], y_ref[0], preferred_element_type=jnp.float32)
    o_ref[0] = (o + bt_ref[...]).astype(o_ref.dtype)


def time_projection(y, wt, bt):
    B, L, c = y.shape
    P = wt.shape[0]
    return pl.pallas_call(
        _time_proj_kernel,
        out_shape=jax.ShapeDtypeStruct((B, P, c), jnp.float32),
        grid=(B,),
        in_specs=[
            pl.BlockSpec((1, L, c), lambda b: (b, 0, 0)),
            pl.BlockSpec((P, L), lambda b: (0, 0)),
            pl.BlockSpec((P, 1), lambda b: (0, 0)),
        ],
        out_specs=pl.BlockSpec((1, P, c), lambda b: (b, 0, 0)),
        compiler_params=_cparams(("parallel",)),
    )(y.astype(jnp.bfloat16), wt.astype(jnp.bfloat16),
      bt.reshape(P, 1).astype(jnp.float32))


# ---------------------------------------------------------------------------
# Model glue (plain JAX)
# ---------------------------------------------------------------------------
def batchnorm1d(x, gamma, beta, eps=1e-5):
    # TODO(synk): PyTorch BatchNorm1d in eval mode uses running statistics;
    # batch statistics (training-mode behaviour) are used here.
    xf = x.astype(jnp.float32)
    mean = jnp.mean(xf, axis=(0, 1), keepdims=True)
    var = jnp.mean((xf - mean) ** 2, axis=(0, 1), keepdims=True)
    y = (xf - mean) * jax.lax.rsqrt(var + eps) * gamma + beta
    return y.astype(x.dtype)


def encoder_layer(x, p, cfg):
    H = cfg["n_heads"]
    o = flash_attention(x, x, p["attn"], H, causal=False)
    x = attn_out_ln(o, x, p["attn"]["wo3"], p["attn"]["bo"],
                    p["ln1_g"], p["ln1_b"])
    y = linear(x, p["ffn_w1"], p["ffn_b1"], activation=cfg["activation"])
    return linear(y, p["ffn_w2"], p["ffn_b2"],
                  residual=x, ln=(p["ln2_g"], p["ln2_b"]))


def decoder_layer(x, cross, p, cfg):
    H = cfg["n_heads"]
    o = flash_attention(x, x, p["self_attn"], H, causal=True)
    x = attn_out_ln(o, x, p["self_attn"]["wo3"], p["self_attn"]["bo"],
                    p["ln1_g"], p["ln1_b"])
    o = flash_attention(x, cross, p["cross_attn"], H, causal=False)
    x = attn_out_ln(o, x, p["cross_attn"]["wo3"], p["cross_attn"]["bo"],
                    p["ln2_g"], p["ln2_b"])
    y = linear(x, p["ffn_w1"], p["ffn_b1"], activation=cfg["activation"])
    return linear(y, p["ffn_w2"], p["ffn_b2"],
                  residual=x, ln=(p["ln3_g"], p["ln3_b"]))


def forward(params, cfg, x_enc, x_mark_enc, y_batch, x_mark_dec, mode):
    del y_batch, x_mark_dec, mode
    marks = x_mark_enc[:, :, jnp.array(cfg["mark_index"])]           # (B, L, M)

    # D2V embedding -> sum(-1) -> + x_enc -> (D -> d_model) projection, fused.
    transformer_input = d2v_fourier_proj(x_enc, marks, params["d2v"],
                                         params["proj_w"], params["proj_b"])

    enc = transformer_input
    for lp in params["enc_layers"]:
        enc = encoder_layer(enc, lp, cfg)
    enc = batchnorm1d(enc, params["enc_bn_g"], params["enc_bn_b"])

    dec = transformer_input
    for lp in params["dec_layers"]:
        dec = decoder_layer(dec, enc, lp, cfg)
    dec = batchnorm1d(dec, params["dec_bn_g"], params["dec_bn_b"])

    # decoder projection (d_model -> c_out) as a row-tiled linear, then the
    # (P, L) x (L, c_out) time contraction per batch element.
    dec = linear(dec, params["dec_proj_w"], params["dec_proj_b"])
    return time_projection(dec, params["out_wt"], params["out_b"])   # (B,P,c)


# ---------------------------------------------------------------------------
# Deterministic parameter init (synthetic, mirrors __init__ shapes)
# ---------------------------------------------------------------------------
def init_params(key, cfg):
    keys = iter(jax.random.split(key, 256))

    def w(shape, scale=0.05):
        return (jax.random.normal(next(keys), shape) * scale).astype(jnp.float32)

    def zeros(shape):
        return jnp.zeros(shape, jnp.float32)

    def ones(shape):
        return jnp.ones(shape, jnp.float32)

    dm, dff, D = cfg["d_model"], cfg["d_ff"], cfg["d_feature"]
    H = cfg["n_heads"]
    E = dm // H
    M = len(cfg["mark_index"])
    K = cfg["t2v_outmodel"]

    def per_head(mat):                    # (dm, dm) -> (H, dm, E), head-major
        return mat.reshape(dm, H, E).transpose(1, 0, 2)

    def attn_params():
        return dict(
            wq=per_head(w((dm, dm))), bq=zeros((H, 1, E)),
            wk=per_head(w((dm, dm))), bk=zeros((H, 1, E)),
            wv=per_head(w((dm, dm))), bv=zeros((H, 1, E)),
            wo3=w((dm, dm)).reshape(H, E, dm), bo=zeros((dm,)),
        )

    def enc_layer_params():
        return dict(
            attn=attn_params(),
            ffn_w1=w((dm, dff)), ffn_b1=zeros((dff,)),
            ffn_w2=w((dff, dm)), ffn_b2=zeros((dm,)),
            ln1_g=ones((dm,)), ln1_b=zeros((dm,)),
            ln2_g=ones((dm,)), ln2_b=zeros((dm,)),
        )

    def dec_layer_params():
        return dict(
            self_attn=attn_params(),
            cross_attn=attn_params(),
            ffn_w1=w((dm, dff)), ffn_b1=zeros((dff,)),
            ffn_w2=w((dff, dm)), ffn_b2=zeros((dm,)),
            ln1_g=ones((dm,)), ln1_b=zeros((dm,)),
            ln2_g=ones((dm,)), ln2_b=zeros((dm,)),
            ln3_g=ones((dm,)), ln3_b=zeros((dm,)),
        )

    # D2V constants: column selector (1 = linear component) and the group-sum
    # matrix (sum over the K components of each feature; folded into proj_w).
    col = jnp.arange(D * K)
    sel = (col % K == 0).astype(jnp.float32).reshape(1, D * K)
    gsum = (col[:, None] // K == jnp.arange(D)[None, :]).astype(jnp.float32)

    return dict(
        d2v=dict(w=w((M, D * K), 1.0), b=zeros((D * K,)), sel=sel, gsum=gsum),
        proj_w=w((D, dm)), proj_b=zeros((dm,)),
        enc_layers=[enc_layer_params() for _ in range(cfg["e_layers"])],
        enc_bn_g=ones((dm,)), enc_bn_b=zeros((dm,)),
        dec_layers=[dec_layer_params() for _ in range(cfg["d_layers"])],
        dec_bn_g=ones((dm,)), dec_bn_b=zeros((dm,)),
        dec_proj_w=w((dm, cfg["c_out"])), dec_proj_b=zeros((cfg["c_out"],)),
        out_wt=w((cfg["pred_len"], cfg["seq_len"])),   # (P, L): contract over L
        out_b=zeros((cfg["pred_len"],)),
    )


# ---------------------------------------------------------------------------
if __name__ == "__main__":
    cfg = dict(
        seq_len=8,
        label_len=4,
        pred_len=4,
        d_mark=4,
        mark_index=(0, 1, 2),
        d_feature=4,
        d_model=32,
        n_heads=4,
        d_ff=64,
        e_layers=1,
        d_layers=1,
        t2v_outmodel=6,
        c_out=4,
        activation="gelu",
    )

    key = jax.random.PRNGKey(0)
    kp, k1, k2, k3, k4 = jax.random.split(key, 5)

    B = 2
    x_enc = jax.random.normal(k1, (B, cfg["seq_len"], cfg["d_feature"]), jnp.float32)
    x_mark_enc = jax.random.normal(k2, (B, cfg["seq_len"], cfg["d_mark"]), jnp.float32)
    y_batch = jax.random.normal(
        k3, (B, cfg["label_len"] + cfg["pred_len"], cfg["d_feature"]), jnp.float32)
    x_mark_dec = jax.random.normal(
        k4, (B, cfg["label_len"] + cfg["pred_len"], cfg["d_mark"]), jnp.float32)

    params = init_params(kp, cfg)

    out = forward(params, cfg, x_enc, x_mark_enc, y_batch, x_mark_dec, mode="norm")
    out = jax.block_until_ready(out)

    assert out.shape == (B, cfg["pred_len"], cfg["c_out"]), out.shape
    assert bool(jnp.all(jnp.isfinite(out)))
    print("KERNEL_OK")
</pallas_src>

<mosaic_0001>
module attributes {stable_mosaic.version = 11 : i64} {
  func.func @_d2v_proj_kernel(%arg0: i32, %arg1: memref<8x3xbf16, #tpu.memory_space<vmem>>, %arg2: memref<8x4xbf16, #tpu.memory_space<vmem>>, %arg3: memref<3x24xbf16, #tpu.memory_space<vmem>>, %arg4: memref<1x24xf32, #tpu.memory_space<vmem>>, %arg5: memref<1x24xf32, #tpu.memory_space<vmem>>, %arg6: memref<24x32xbf16, #tpu.memory_space<vmem>>, %arg7: memref<4x32xbf16, #tpu.memory_space<vmem>>, %arg8: memref<1x32xf32, #tpu.memory_space<vmem>>, %arg9: memref<8x32xbf16, #tpu.memory_space<vmem>>) attributes {dimension_semantics = [#tpu.dimension_semantics<parallel>], iteration_bounds = array<i64: 2>, scalar_prefetch = 0 : i64, scratch_operands = 0 : i64, tpu.core_type = #tpu.core_type<tc>, window_params = [{transform_indices = @transform_0, window_bounds = array<i64: 8, 3>}, {transform_indices = @transform_1, window_bounds = array<i64: 8, 4>}, {pipeline_mode = #tpu.pipeline_mode<synchronous>, transform_indices = @transform_2, window_bounds = array<i64: 3, 24>}, {pipeline_mode = #tpu.pipeline_mode<synchronous>, transform_indices = @transform_3, window_bounds = array<i64: 1, 24>}, {pipeline_mode = #tpu.pipeline_mode<synchronous>, transform_indices = @transform_4, window_bounds = array<i64: 1, 24>}, {pipeline_mode = #tpu.pipeline_mode<synchronous>, transform_indices = @transform_5, window_bounds = array<i64: 24, 32>}, {pipeline_mode = #tpu.pipeline_mode<synchronous>, transform_indices = @transform_6, window_bounds = array<i64: 4, 32>}, {pipeline_mode = #tpu.pipeline_mode<synchronous>, transform_indices = @transform_7, window_bounds = array<i64: 1, 32>}, {transform_indices = @transform_8, window_bounds = array<i64: 8, 32>}]} {
    %c0 = arith.constant 0 : index
    %c0_0 = arith.constant 0 : index
    %0 = vector.load %arg1[%c0, %c0_0] : memref<8x3xbf16, #tpu.memory_space<vmem>>, vector<8x3xbf16>
    %c0_1 = arith.constant 0 : index
    %c0_2 = arith.constant 0 : index
    %1 = vector.load %arg3[%c0_1, %c0_2] : memref<3x24xbf16, #tpu.memory_space<vmem>>, vector<3x24xbf16>
    %cst = arith.constant dense<0.000000e+00> : vector<8x24xf32>
    %2 = tpu.matmul %0, %1, %cst {dimension_numbers = #tpu.dot_dimension_numbers<[1], [0], [0], [1], [0, 0, 1, 1], [], []>} : vector<8x3xbf16>, vector<3x24xbf16>, vector<8x24xf32> -> vector<8x24xf32>
    %c0_3 = arith.constant 0 : index
    %c0_4 = arith.constant 0 : index
    %3 = vector.load %arg4[%c0_3, %c0_4] : memref<1x24xf32, #tpu.memory_space<vmem>>, vector<1x24xf32>
    %4 = vector.broadcast %3 : vector<1x24xf32> to vector<8x24xf32>
    %5 = arith.addf %2, %4 : vector<8x24xf32>
    %c0_5 = arith.constant 0 : index
    %c0_6 = arith.constant 0 : index
    %6 = vector.load %arg5[%c0_5, %c0_6] : memref<1x24xf32, #tpu.memory_space<vmem>>, vector<1x24xf32>
    %7 = vector.broadcast %6 : vector<1x24xf32> to vector<8x24xf32>
    %8 = arith.mulf %7, %5 : vector<8x24xf32>
    %cst_7 = arith.constant 1.000000e+00 : f32
    %9 = vector.broadcast %cst_7 : f32 to vector<1x24xf32>
    %10 = arith.subf %9, %6 : vector<1x24xf32>
    %11 = math.sin %5 : vector<8x24xf32>
    %12 = vector.broadcast %10 : vector<1x24xf32> to vector<8x24xf32>
    %13 = arith.mulf %12, %11 : vector<8x24xf32>
    %14 = arith.addf %8, %13 : vector<8x24xf32>
    %15 = arith.truncf %14 : vector<8x24xf32> to vector<8x24xbf16>
    %c0_8 = arith.constant 0 : index
    %c0_9 = arith.constant 0 : index
    %16 = vector.load %arg6[%c0_8, %c0_9] : memref<24x32xbf16, #tpu.memory_space<vmem>>, vector<24x32xbf16>
    %cst_10 = arith.constant dense<0.000000e+00> : vector<8x32xf32>
    %17 = tpu.matmul %15, %16, %cst_10 {dimension_numbers = #tpu.dot_dimension_numbers<[1], [0], [0], [1], [0, 0, 1, 1], [], []>} : vector<8x24xbf16>, vector<24x32xbf16>, vector<8x32xf32> -> vector<8x32xf32>
    %c0_11 = arith.constant 0 : index
    %c0_12 = arith.constant 0 : index
    %18 = vector.load %arg2[%c0_11, %c0_12] : memref<8x4xbf16, #tpu.memory_space<vmem>>, vector<8x4xbf16>
    %c0_13 = arith.constant 0 : index
    %c0_14 = arith.constant 0 : index
    %19 = vector.load %arg7[%c0_13, %c0_14] : memref<4x32xbf16, #tpu.memory_space<vmem>>, vector<4x32xbf16>
    %cst_15 = arith.constant dense<0.000000e+00> : vector<8x32xf32>
    %20 = tpu.matmul %18, %19, %cst_15 {dimension_numbers = #tpu.dot_dimension_numbers<[1], [0], [0], [1], [0, 0, 1, 1], [], []>} : vector<8x4xbf16>, vector<4x32xbf16>, vector<8x32xf32> -> vector<8x32xf32>
    %21 = arith.addf %17, %20 : vector<8x32xf32>
    %c0_16 = arith.constant 0 : index
    %c0_17 = arith.constant 0 : index
    %22 = vector.load %arg8[%c0_16, %c0_17] : memref<1x32xf32, #tpu.memory_space<vmem>>, vector<1x32xf32>
    %23 = vector.broadcast %22 : vector<1x32xf32> to vector<8x32xf32>
    %24 = arith.addf %21, %23 : vector<8x32xf32>
    %25 = arith.truncf %24 : vector<8x32xf32> to vector<8x32xbf16>
    %c0_18 = arith.constant 0 : index
    %c0_19 = arith.constant 0 : index
    %26 = vector.load %arg9[%c0_18, %c0_19] : memref<8x32xbf16, #tpu.memory_space<vmem>>, vector<8x32xbf16>
    tpu.vector_store %arg9[%c0_18, %c0_19], %25 {strides = array<i32>} : memref<8x32xbf16, #tpu.memory_space<vmem>>, vector<8x32xbf16>,
    return
  }
  func.func @transform_0(%arg0: i32) -> (i32, i32) {
    %c0_i32 = arith.constant 0 : i32
    %c0_i32_0 = arith.constant 0 : i32
    return %arg0, %c0_i32 : i32, i32
  }
  func.func @transform_1(%arg0: i32) -> (i32, i32) {
    %c0_i32 = arith.constant 0 : i32
    %c0_i32_0 = arith.constant 0 : i32
    return %arg0, %c0_i32 : i32, i32
  }
  func.func @transform_2(%arg0: i32) -> (i32, i32) {
    %c0_i32 = arith.constant 0 : i32
    %c0_i32_0 = arith.constant 0 : i32
    %c0_i32_1 = arith.constant 0 : i32
    return %c0_i32, %c0_i32_0 : i32, i32
  }
  func.func @transform_3(%arg0: i32) -> (i32, i32) {
    %c0_i32 = arith.constant 0 : i32
    %c0_i32_0 = arith.constant 0 : i32
    %c0_i32_1 = arith.constant 0 : i32
    return %c0_i32, %c0_i32_0 : i32, i32
  }
  func.func @transform_4(%arg0: i32) -> (i32, i32) {
    %c0_i32 = arith.constant 0 : i32
    %c0_i32_0 = arith.constant 0 : i32
    %c0_i32_1 = arith.constant 0 : i32
    return %c0_i32, %c0_i32_0 : i32, i32
  }
  func.func @transform_5(%arg0: i32) -> (i32, i32) {
    %c0_i32 = arith.constant 0 : i32
    %c0_i32_0 = arith.constant 0 : i32
    %c0_i32_1 = arith.constant 0 : i32
    return %c0_i32, %c0_i32_0 : i32, i32
  }
  func.func @transform_6(%arg0: i32) -> (i32, i32) {
    %c0_i32 = arith.constant 0 : i32
    %c0_i32_0 = arith.constant 0 : i32
    %c0_i32_1 = arith.constant 0 : i32
    return %c0_i32, %c0_i32_0 : i32, i32
  }
  func.func @transform_7(%arg0: i32) -> (i32, i32) {
    %c0_i32 = arith.constant 0 : i32
    %c0_i32_0 = arith.constant 0 : i32
    %c0_i32_1 = arith.constant 0 : i32
    return %c0_i32, %c0_i32_0 : i32, i32
  }
  func.func @transform_8(%arg0: i32) -> (i32, i32) {
    %c0_i32 = arith.constant 0 : i32
    %c0_i32_0 = arith.constant 0 : i32
    return %arg0, %c0_i32 : i32, i32
  }
}

</mosaic_0001>

<llo_original>
// kernel: tpu_custom_call.1
$region0: #{tpu_custom_call.1}
  #allocation0 [shape = 'u32[]', space=smem, size = 0x4, offset = 0x4, fixed_abs, tag = 'smem constant byte address 0x4 - core index']
  #allocation1 [shape = 'u32[144,128]{1,0:T(1,128)}', space=vmem, size = 0x12000, scoped, tag = 'internal scratch']
  %s0 = inlined_call_operand.vmem [shape: bf16[16,3], index: 0, kind: input, shape index: {}]
  %s1 = inlined_call_operand.vmem [shape: bf16[16,4], index: 1, kind: input, shape index: {}]
  %s2 = inlined_call_operand.vmem [shape: bf16[3,24], index: 2, kind: input, shape index: {}]
  %s3 = inlined_call_operand.vmem [shape: f32[1,24], index: 3, kind: input, shape index: {}]
  %s4 = inlined_call_operand.vmem [shape: f32[1,24], index: 4, kind: input, shape index: {}]
  %s5 = inlined_call_operand.vmem [shape: bf16[24,32], index: 5, kind: input, shape index: {}]
  %s6 = inlined_call_operand.vmem [shape: bf16[4,32], index: 6, kind: input, shape index: {}]
  %s7 = inlined_call_operand.vmem [shape: f32[1,32], index: 7, kind: input, shape index: {}]
  %s8 = inlined_call_operand.hbm [shape: bf16[16,32], index: 8, kind: output, shape index: {}]
  %s9 = sld [smem:[#allocation0]]
  $region65: #{tpu_custom_call.1} parent=0
    _
  %s11 = ssub.s32 1, %s9
  %s12 = scalar_select 0, %s11, %s9
  $region1: #{tpu_custom_call.1} parent=0
    #allocation2 [shape = 'u8[4096]{0}', space=vmem, size = 0x1000, scoped, tag = 'output window, operand 0']
    #allocation3 [shape = 's32[2]{0}', space=sflag, size = 0x8, scoped, tag = 'scoped memory for tpu_custom_call.1']
    %13 = vsyncpa [#allocation3], 0
    %s14 = scalar_lea.sflag [#allocation3], 1
    %15 = vsyncpa %s14, 0
    loop: start=0, step=1, limit=4
    $region2: #{tpu_custom_call.1} parent=1 // loop_pre_header
      _
    $region3: #{tpu_custom_call.1} parent=1 // loop_header
      %s17 = sphi 0, %s21
      %p18 = scmp.ge.s32.totalorder %s17, 4
      %s27 = sphi 0, %s29
      %s30 = sphi 0, %s27
      %s31 = sphi 0, %s30
      %s47 = sphi 0, %s31
      %s53 = sphi 0, %s55
      %s56 = sphi 0, %s53
      %s57 = sphi 0, %s56
      %s73 = sphi 0, %s57
      %s77 = sphi 0, %s77
      %s79 = sphi 0, %s77
      %s80 = sphi 0, %s79
      %s94 = sphi 0, %s80
      %s98 = sphi 0, %s98
      %s100 = sphi 0, %s98
      %s101 = sphi 0, %s100
      %s115 = sphi 0, %s101
      %s119 = sphi 0, %s119
      %s121 = sphi 0, %s119
      %s122 = sphi 0, %s121
      %s136 = sphi 0, %s122
      %s140 = sphi 0, %s140
      %s142 = sphi 0, %s140
      %s143 = sphi 0, %s142
      %s157 = sphi 0, %s143
      %s161 = sphi 0, %s161
      %s163 = sphi 0, %s161
      %s164 = sphi 0, %s163
      %s178 = sphi 0, %s164
      %s182 = sphi 0, %s182
      %s184 = sphi 0, %s182
      %s185 = sphi 0, %s184
      %s199 = sphi 0, %s185
      %s205 = sphi 0, %s207
      %s208 = sphi 0, %s205
      %s209 = sphi 0, %s208
      %s225 = sphi 0, %s209
    $region4: #{tpu_custom_call.1} parent=1 // loop_header_branch
      %20 = sbr.rel (%p18) target = $region8
    $region5: #{tpu_custom_call.1} parent=1 // loop_body
      %s22 = ssub.s32 %s17, 1
      %s23 = ssub.s32 %s17, 2
      %s24 = sadd.s32 %s17, 1
      %s25 = ssub.s32 %s17, %s24
      %p26 = scmp.eq.s32.totalorder %s25, 0
      %s28 = sadd.s32 %s27, 1
      %s29 = scalar_select %p26, %s27, %s28
      %p32 = pneg %p26
      %p33 = scmp.eq.s32.totalorder %s17, 1
      %p34 = por %p32, %p33
      %p35 = scmp.ne.s32.totalorder %s27, %s30
      %p36 = scmp.eq.s32.totalorder %s17, 0
      %p37 = por %p35, %p36
      %p38 = scmp.ne.s32.totalorder %s27, %s30
      %p39 = scmp.eq.s32.totalorder %s22, 1
      %p40 = por %p38, %p39
      %p41 = scmp.ne.s32.totalorder %s30, %s31
      %p42 = scmp.eq.s32.totalorder %s22, 0
      %p43 = por %p41, %p42
      %p44 = scmp.ne.s32.totalorder %s30, %s31
      %p45 = scmp.eq.s32.totalorder %s23, 1
      %p46 = por %p44, %p45
      %p48 = scmp.ne.s32.totalorder %s31, %s47
      %p49 = scmp.eq.s32.totalorder %s23, 0
      %p50 = por %p48, %p49
      %s51 = ssub.s32 %s17, %s24
      %p52 = scmp.eq.s32.totalorder %s51, 0
      %s54 = sadd.s32 %s53, 1
      %s55 = scalar_select %p52, %s53, %s54
      %p58 = pneg %p52
      %p59 = scmp.eq.s32.totalorder %s17, 1
      %p60 = por %p58, %p59
      %p61 = scmp.ne.s32.totalorder %s53, %s56
      %p62 = scmp.eq.s32.totalorder %s17, 0
      %p63 = por %p61, %p62
      %p64 = scmp.ne.s32.totalorder %s53, %s56
      %p65 = scmp.eq.s32.totalorder %s22, 1
      %p66 = por %p64, %p65
      %p67 = scmp.ne.s32.totalorder %s56, %s57
      %p68 = scmp.eq.s32.totalorder %s22, 0
      %p69 = por %p67, %p68
      %p70 = scmp.ne.s32.totalorder %s56, %s57
      %p71 = scmp.eq.s32.totalorder %s23, 1
      %p72 = por %p70, %p71
      %p74 = scmp.ne.s32.totalorder %s57, %s73
      %p75 = scmp.eq.s32.totalorder %s23, 0
      %p76 = por %p74, %p75
      %s78 = sadd.s32 %s77, 1
      %p81 = scmp.eq.s32.totalorder %s17, 1
      %p82 = scmp.ne.s32.totalorder %s77, %s79
      %p83 = scmp.eq.s32.totalorder %s17, 0
      %p84 = por %p82, %p83
      %p85 = scmp.ne.s32.totalorder %s77, %s79
      %p86 = scmp.eq.s32.totalorder %s22, 1
      %p87 = por %p85, %p86
      %p88 = scmp.ne.s32.totalorder %s79, %s80
      %p89 = scmp.eq.s32.totalorder %s22, 0
      %p90 = por %p88, %p89
      %p91 = scmp.ne.s32.totalorder %s79, %s80
      %p92 = scmp.eq.s32.totalorder %s23, 1
      %p93 = por %p91, %p92
      %p95 = scmp.ne.s32.totalorder %s80, %s94
      %p96 = scmp.eq.s32.totalorder %s23, 0
      %p97 = por %p95, %p96
      %s99 = sadd.s32 %s98, 1
      %p102 = scmp.eq.s32.totalorder %s17, 1
      %p103 = scmp.ne.s32.totalorder %s98, %s100
      %p104 = scmp.eq.s32.totalorder %s17, 0
      %p105 = por %p103, %p104
      %p106 = scmp.ne.s32.totalorder %s98, %s100
      %p107 = scmp.eq.s32.totalorder %s22, 1
      %p108 = por %p106, %p107
      %p109 = scmp.ne.s32.totalorder %s100, %s101
      %p110 = scmp.eq.s32.totalorder %s22, 0
      %p111 = por %p109, %p110
      %p112 = scmp.ne.s32.totalorder %s100, %s101
      %p113 = scmp.eq.s32.totalorder %s23, 1
      %p114 = por %p112, %p113
      %p116 = scmp.ne.s32.totalorder %s101, %s115
      %p117 = scmp.eq.s32.totalorder %s23, 0
      %p118 = por %p116, %p117
      %s120 = sadd.s32 %s119, 1
      %p123 = scmp.eq.s32.totalorder %s17, 1
      %p124 = scmp.ne.s32.totalorder %s119, %s121
      %p125 = scmp.eq.s32.totalorder %s17, 0
      %p126 = por %p124, %p125
      %p127 = scmp.ne.s32.totalorder %s119, %s121
      %p128 = scmp.eq.s32.totalorder %s22, 1
      %p129 = por %p127, %p128
      %p130 = scmp.ne.s32.totalorder %s121, %s122
      %p131 = scmp.eq.s32.totalorder %s22, 0
      %p132 = por %p130, %p131
      %p133 = scmp.ne.s32.totalorder %s121, %s122
      %p134 = scmp.eq.s32.totalorder %s23, 1
      %p135 = por %p133, %p134
      %p137 = scmp.ne.s32.totalorder %s122, %s136
      %p138 = scmp.eq.s32.totalorder %s23, 0
      %p139 = por %p137, %p138
      %s141 = sadd.s32 %s140, 1
      %p144 = scmp.eq.s32.totalorder %s17, 1
      %p145 = scmp.ne.s32.totalorder %s140, %s142
      %p146 = scmp.eq.s32.totalorder %s17, 0
      %p147 = por %p145, %p146
      %p148 = scmp.ne.s32.totalorder %s140, %s142
      %p149 = scmp.eq.s32.totalorder %s22, 1
      %p150 = por %p148, %p149
      %p151 = scmp.ne.s32.totalorder %s142, %s143
      %p152 = scmp.eq.s32.totalorder %s22, 0
      %p153 = por %p151, %p152
      %p154 = scmp.ne.s32.totalorder %s142, %s143
      %p155 = scmp.eq.s32.totalorder %s23, 1
      %p156 = por %p154, %p155
      %p158 = scmp.ne.s32.totalorder %s143, %s157
      %p159 = scmp.eq.s32.totalorder %s23, 0
      %p160 = por %p158, %p159
      %s162 = sadd.s32 %s161, 1
      %p165 = scmp.eq.s32.totalorder %s17, 1
      %p166 = scmp.ne.s32.totalorder %s161, %s163
      %p167 = scmp.eq.s32.totalorder %s17, 0
      %p168 = por %p166, %p167
      %p169 = scmp.ne.s32.totalorder %s161, %s163
      %p170 = scmp.eq.s32.totalorder %s22, 1
      %p171 = por %p169, %p170
      %p172 = scmp.ne.s32.totalorder %s163, %s164
      %p173 = scmp.eq.s32.totalorder %s22, 0
      %p174 = por %p172, %p173
      %p175 = scmp.ne.s32.totalorder %s163, %s164
      %p176 = scmp.eq.s32.totalorder %s23, 1
      %p177 = por %p175, %p176
      %p179 = scmp.ne.s32.totalorder %s164, %s178
      %p180 = scmp.eq.s32.totalorder %s23, 0
      %p181 = por %p179, %p180
      %s183 = sadd.s32 %s182, 1
      %p186 = scmp.eq.s32.totalorder %s17, 1
      %p187 = scmp.ne.s32.totalorder %s182, %s184
      %p188 = scmp.eq.s32.totalorder %s17, 0
      %p189 = por %p187, %p188
      %p190 = scmp.ne.s32.totalorder %s182, %s184
      %p191 = scmp.eq.s32.totalorder %s22, 1
      %p192 = por %p190, %p191
      %p193 = scmp.ne.s32.totalorder %s184, %s185
      %p194 = scmp.eq.s32.totalorder %s22, 0
      %p195 = por %p193, %p194
      %p196 = scmp.ne.s32.totalorder %s184, %s185
      %p197 = scmp.eq.s32.totalorder %s23, 1
      %p198 = por %p196, %p197
      %p200 = scmp.ne.s32.totalorder %s185, %s199
      %p201 = scmp.eq.s32.totalorder %s23, 0
      %p202 = por %p200, %p201
      %s203 = ssub.s32 %s17, %s24
      %p204 = scmp.eq.s32.totalorder %s203, 0
      %s206 = sadd.s32 %s205, 1
      %s207 = scalar_select %p204, %s205, %s206
      %p210 = pneg %p204
      %p211 = scmp.eq.s32.totalorder %s17, 1
      %p212 = por %p210, %p211
      %p213 = scmp.ne.s32.totalorder %s205, %s208
      %p214 = scmp.eq.s32.totalorder %s17, 0
      %p215 = por %p213, %p214
      %p216 = scmp.ne.s32.totalorder %s205, %s208
      %p217 = scmp.eq.s32.totalorder %s22, 1
      %p218 = por %p216, %p217
      %p219 = scmp.ne.s32.totalorder %s208, %s209
      %p220 = scmp.eq.s32.totalorder %s22, 0
      %p221 = por %p219, %p220
      %p222 = scmp.ne.s32.totalorder %s208, %s209
      %p223 = scmp.eq.s32.totalorder %s23, 1
      %p224 = por %p222, %p223
      %p226 = scmp.ne.s32.totalorder %s209, %s225
      %p227 = scmp.eq.s32.totalorder %s23, 0
      %p228 = por %p226, %p227
      %p229 = scmp.le.s32.totalorder 1, %s17
      %p230 = scmp.lt.s32.totalorder %s17, 3
      %p231 = pnand %p229, %p230
      %p232 = pneg %p231
      // Predicated region
      $region9: #{tpu_custom_call.1} parent=5 // pred_check
        _
      $region10: #{tpu_custom_call.1} parent=5 // pred_check_branch
        %234 = sbr.rel (%p231) target = $region12
      $region11: #{tpu_custom_call.1} parent=5 // pred_region
        %s235 = ssub.s32 %s17, 1
        // Predicated region
        $region13: #{tpu_custom_call.1} parent=11 // pred_check
          %p236 = pneg %p90
        $region14: #{tpu_custom_call.1} parent=11 // pred_check_branch
          %238 = sbr.rel (%p236) target = $region16
        $region15: #{tpu_custom_call.1} parent=11 // pred_region
          _
        $region16: #{tpu_custom_call.1} parent=11 // pred_fallthru
          _
        // Predicated region
        $region17: #{tpu_custom_call.1} parent=11 // pred_check
          %p239 = pneg %p111
        $region18: #{tpu_custom_call.1} parent=11 // pred_check_branch
          %241 = sbr.rel (%p239) target = $region20
        $region19: #{tpu_custom_call.1} parent=11 // pred_region
          _
        $region20: #{tpu_custom_call.1} parent=11 // pred_fallthru
          _
        // Predicated region
        $region21: #{tpu_custom_call.1} parent=11 // pred_check
          %p242 = pneg %p132
        $region22: #{tpu_custom_call.1} parent=11 // pred_check_branch
          %244 = sbr.rel (%p242) target = $region24
        $region23: #{tpu_custom_call.1} parent=11 // pred_region
          _
        $region24: #{tpu_custom_call.1} parent=11 // pred_fallthru
          _
        // Predicated region
        $region25: #{tpu_custom_call.1} parent=11 // pred_check
          %p245 = pneg %p153
        $region26: #{tpu_custom_call.1} parent=11 // pred_check_branch
          %247 = sbr.rel (%p245) target = $region28
        $region27: #{tpu_custom_call.1} parent=11 // pred_region
          _
        $region28: #{tpu_custom_call.1} parent=11 // pred_fallthru
          _
        // Predicated region
        $region29: #{tpu_custom_call.1} parent=11 // pred_check
          %p248 = pneg %p174
        $region30: #{tpu_custom_call.1} parent=11 // pred_check_branch
          %250 = sbr.rel (%p248) target = $region32
        $region31: #{tpu_custom_call.1} parent=11 // pred_region
          _
        $region32: #{tpu_custom_call.1} parent=11 // pred_fallthru
          _
        // Predicated region
        $region33: #{tpu_custom_call.1} parent=11 // pred_check
          %p251 = pneg %p195
        $region34: #{tpu_custom_call.1} parent=11 // pred_check_branch
          %253 = sbr.rel (%p251) target = $region36
        $region35: #{tpu_custom_call.1} parent=11 // pred_region
          _
        $region36: #{tpu_custom_call.1} parent=11 // pred_fallthru
          _
      $region12: #{tpu_custom_call.1} parent=5 // pred_fallthru
        _
      %p254 = scmp.lt.s32.totalorder %s17, 2
      // Predicated region
      $region37: #{tpu_custom_call.1} parent=5 // pred_check
        %p255 = pneg %p254
      $region38: #{tpu_custom_call.1} parent=5 // pred_check_branch
        %257 = sbr.rel (%p255) target = $region40
      $region39: #{tpu_custom_call.1} parent=5 // pred_region
        // Predicated region
        $region41: #{tpu_custom_call.1} parent=39 // pred_check
          %p258 = pneg %p37
        $region42: #{tpu_custom_call.1} parent=39 // pred_check_branch
          %260 = sbr.rel (%p258) target = $region44
        $region43: #{tpu_custom_call.1} parent=39 // pred_region
          %p261 = scmp.lt.s32.totalorder %s17, 1
          %s262 = scalar_select %p261, %s17, 1
          %s263 = smul.addr %s262, 4
          %s264 = scalar_lea.vmem %s0, %s263
        $region44: #{tpu_custom_call.1} parent=39 // pred_fallthru
          _
        // Predicated region
        $region45: #{tpu_custom_call.1} parent=39 // pred_check
          %p265 = pneg %p63
        $region46: #{tpu_custom_call.1} parent=39 // pred_check_branch
          %267 = sbr.rel (%p265) target = $region48
        $region47: #{tpu_custom_call.1} parent=39 // pred_region
          %p268 = scmp.lt.s32.totalorder %s17, 1
          %s269 = scalar_select %p268, %s17, 1
          %s270 = smul.addr %s269, 4
          %s271 = scalar_lea.vmem %s1, %s270
        $region48: #{tpu_custom_call.1} parent=39 // pred_fallthru
          _
      $region40: #{tpu_custom_call.1} parent=5 // pred_fallthru
        _
      %p272 = scmp.le.s32.totalorder 1, %s17
      %p273 = scmp.lt.s32.totalorder %s17, 3
      %p274 = pnand %p272, %p273
      %p275 = pneg %p274
      // Predicated region
      $region49: #{tpu_custom_call.1} parent=5 // pred_check
        _
      $region50: #{tpu_custom_call.1} parent=5 // pred_check_branch
        %277 = sbr.rel (%p274) target = $region52
      $region51: #{tpu_custom_call.1} parent=5 // pred_region
        %s278 = ssub.s32 %s17, 1
        %p279 = scmp.lt.s32.totalorder %s22, 1
        %s280 = scalar_select %p279, %s22, 1
        %s281 = smul.addr %s280, 4
        %s282 = scalar_lea.vmem %s0, %s281
        %p283 = pneg %p43
        %p284 = pneg %p40
        %p285 = scmp.lt.s32.totalorder %s22, 1
        %s286 = scalar_select %p285, %s22, 1
        %s287 = smul.addr %s286, 4
        %s288 = scalar_lea.vmem %s1, %s287
        %p289 = pneg %p69
        %p290 = pneg %p66
        %p291 = pneg %p90
        %p292 = pneg %p87
        %p293 = pneg %p111
        %p294 = pneg %p108
        %p295 = pneg %p132
        %p296 = pneg %p129
        %p297 = pneg %p153
        %p298 = pneg %p150
        %p299 = pneg %p174
        %p300 = pneg %p171
        %p301 = pneg %p195
        %p302 = pneg %p192
        %p303 = pneg %p221
        %p304 = pneg %p218
        %s305 = sand.u32 %s208, 1
        %s306 = scalar_lea.sflag [#allocation3], %s305
        %s307 = sand.u32 %s208, 1
        %s308 = smul.addr %s307, 4
        %s309 = scalar_lea.vmem [#allocation2], %s308
        %p310 = scmp.lt.s32.totalorder %s22, 1
        %s311 = scalar_select %p310, %s22, 1
        %s312 = smul.addr %s311, 4
        %s313 = scalar_lea.vmem %s0, %s312
        %p314 = scmp.lt.s32.totalorder %s22, 1
        %s315 = scalar_select %p314, %s22, 1
        %s316 = smul.addr %s315, 4
        %s317 = scalar_lea.vmem %s1, %s316
        %v319 = vld [vmem:[%s313] sm:$0xf]
        %v320 = vld [vmem:[%s2] sm:$0x3]
        %v321 = vld [vmem:[%s3] sm:$0x1]
        %v323 = vlaneseq
        %v324 = vshrl.u32 %v323, 7
        %v325 = vsub.s32 0, %v324
        %v326 = vrot.slane %v321, %v325
        %vm328 = vcmask 23552
        %v330 = vsel %vm328, %v319, 0
        %vm332 = vcmask 1040384
        %vm333 = vcmask 1041408
        %v334 = vsel %vm332, 4294967295, 65535
        %v335 = vsel %vm333, %v334, 0
        %v337 = vand.u32 %v320, %v335
        %339 = vmatprep.subr.bf16.mxu0 0
        %340 = vmatpush1.bf16.msra.mxu0 %v337
        %341 = vmatprep.subr.bf16.mxu0 0
        %342 = vmatpush1.bf16.msra.mxu0 0
        %343 = vmatprep.subr.bf16.mxu0 0
        %344 = vmatpush1.bf16.msra.mxu0 0
        %345 = vmatprep.subr.bf16.mxu0 0
        %346 = vmatpush1.bf16.msra.mxu0 0
        %347 = vmatprep.subr.bf16.mxu0 0
        %348 = vmatpush1.bf16.msra.mxu0 0
        %349 = vmatprep.subr.bf16.mxu0 0
        %350 = vmatpush1.bf16.msra.mxu0 0
        %351 = vmatprep.subr.bf16.mxu0 0
        %352 = vmatpush1.bf16.msra.mxu0 0
        %353 = vmatprep.subr.bf16.mxu0 0
        %354 = vmatpush1.bf16.msra.mxu0 0
        %355 = vmatprep.subr.bf16.mxu0 0
        %356 = vmatpush1.bf16.msra.mxu0 0
        %357 = vmatprep.subr.bf16.mxu0 0
        %358 = vmatpush1.bf16.msra.mxu0 0
        %359 = vmatprep.subr.bf16.mxu0 0
        %360 = vmatpush1.bf16.msra.mxu0 0
        %361 = vmatprep.subr.bf16.mxu0 0
        %362 = vmatpush1.bf16.msra.mxu0 0
        %363 = vmatprep.subr.bf16.mxu0 0
        %364 = vmatpush1.bf16.msra.mxu0 0
        %365 = vmatprep.subr.bf16.mxu0 0
        %366 = vmatpush1.bf16.msra.mxu0 0
        %367 = vmatprep.subr.bf16.mxu0 0
        %368 = vmatpush1.bf16.msra.mxu0 0
        %369 = vmatprep.subr.bf16.mxu0 0
        %370 = vmatpush1.bf16.msra.mxu0 0
        %371 = vmatprep.mubr.bf16.mxu0 0
        %372 = vmatmul.mubr.bf16.gmra.mrb[0].mxu0 %v330
        %v373 = vpop.f32.mrb[0].mxu0
        %v374 = vadd.f32 %v326, %v373
        %v375 = vpop.f32.mrb[0].mxu0
        %v376 = vpop.f32.mrb[0].mxu0
        %v377 = vpop.f32.mrb[0].mxu0
        %378 = vdwg.mxu0
        %v379 = vld [vmem:[%s4] sm:$0x1]
        %v381 = vlaneseq
        %v382 = vshrl.u32 %v381, 7
        %v383 = vsub.s32 0, %v382
        %v384 = vrot.slane %v379, %v383
        %v386 = vmul.f32 %v384, %v374
        %v387 = vsub.f32 1.0, %v379
        %v388 = vand.u32 2147483647, %v374
        %vm389 = vcmp.le.f32.partialorder %v388, 0.7853982
        %vm390 = vcmp.lt.s32.totalorder %v374, 0
        %v391 = vand.u32 %v374, 2139095040
        %v392 = vshrl.u32 %v391, 23
        %v393 = vsub.s32 %v392, 127
        %v394 = vand.u32 2147483647, %v374
        %v395 = vand.u32 %v394, 8388607
        %v396 = vor.u32 %v395, 8388608
        %v397 = vsub.s32 0, %v396
        %v398 = vadd.s32 %v393, 1
        %vm399 = vcmp.gt.s32.totalorder %v398, 0
        %v400 = vsel %vm399, %v398, 0
        %v401 = vshrl.u32 %v400, 5
        %v402 = vand.u32 %v400, 31
        %v403 = vsub.s32 32, %v402
        %v404 = vshrl.u32 683565275, %v403
        %v405 = vshll.u32 683565275, %v402
        %v406 = vshrl.u32 2475754826, %v403
        %v407 = vor.u32 %v405, %v406
        %v408 = vshll.u32 2475754826, %v402
        %v409 = vshrl.u32 2131351028, %v403
        %v410 = vor.u32 %v408, %v409
        %v411 = vshll.u32 2131351028, %v402
        %v412 = vshrl.u32 2102212464, %v403
        %v413 = vor.u32 %v411, %v412
        %v414 = vshll.u32 2102212464, %v402
        %v415 = vshrl.u32 920167782, %v403
        %v416 = vor.u32 %v414, %v415
        %v417 = vshll.u32 920167782, %v402
        %v418 = vshrl.u32 1326507024, %v403
        %v419 = vor.u32 %v417, %v418
        %vm420 = vcmp.lt.s32.totalorder %v401, 1
        %vm421 = vcmp.lt.s32.totalorder %v401, 2
        %vm422 = vcmp.lt.s32.totalorder %v401, 3
        %vm423 = vcmp.lt.s32.totalorder %v401, 4
        %v424 = vsel %vm420, %v404, %v407
        %v425 = vsel %vm423, %v413, 2102212464
        %v426 = vsel %vm422, %v410, %v425
        %v427 = vsel %vm421, %v424, %v426
        %v428 = vsel %vm420, %v407, %v410
        %v429 = vsel %vm423, %v416, 920167782
        %v430 = vsel %vm422, %v413, %v429
        %v431 = vsel %vm421, %v428, %v430
        %v432 = vsel %vm420, %v410, %v413
        %v433 = vsel %vm423, %v419, 1326507024
        %v434 = vsel %vm422, %v416, %v433
        %v435 = vsel %vm421, %v432, %v434
        %v436 = vshll.u32 %v396, 8
        %v437 = vmul.u32.u64.compose %v436, %v435
        %v438 = vextract.low.u32 %v437
        %v439 = vextract.high.u32 %v437
        %v440 = vmul.u32.u64.compose %v436, %v431
        %v441 = vextract.low.u32 %v440
        %v442 = vextract.high.u32 %v440
        %v443 = vmul.u32 %v436, %v427
        %v444 = vadd.s32 %v439, %v441
        %vm445 = vc.u32 %v439, %v441
        %v446 = vadd.s32 %v442, 1
        %v447 = vsel %vm445, %v446, %v442
        %v448 = vadd.s32 %v443, %v447
        %v449 = vadd.s32 %v448, 536870912
        %v450 = vshrl.u32 %v449, 30
        %v451 = vshll.u32 %v450, 30
        %v452 = vsub.s32 %v448, %v451
        %vm453 = vcmp.lt.s32.totalorder %v452, 0
        %v454 = vsub.s32 0, %v452
        %v455 = vsel %vm453, %v454, %v452
        %v456 = vclz %v455
        %v457 = vsub.s32 %v456, 2
        %vm458 = vcmp.gt.s32.totalorder 0, %v457
        %v459 = vsel %vm458, 0, %v457
        %v460 = vsub.s32 32, %v459
        %v461 = vshll.u32 %v452, %v459
        %v462 = vshrl.u32 %v444, %v460
        %v463 = vor.u32 %v461, %v462
        %v464 = vsub.s32 4294967266, %v459
        %v465 = vadd.s32 %v464, 127
        %v466 = vshll.u32 %v465, 23
        %v467 = vor.u32 4788187, %v466
        %v468 = vand.u32 2147483647, %v467
        %v470 = vcvt.s32.f32 %v463
        %v471 = vmul.f32 %v470, %v468
        %v472 = vxor.u32 %v471, 2147483648
        %v473 = vsel %vm390, %v472, %v471
        %v474 = vsub.s32 4, %v450
        %v475 = vsel %vm390, %v474, %v450
        %v476 = vsel %vm389, %v374, %v473
        %v477 = vsel %vm389, 0, %v475
        %v478 = vcosq.f32.pop %v476
        %v479 = vsinq.f32.pop %v476
        %vm480 = vweird.f32 %v374
        %v481 = vadd.s32 %v477, 3
        %v482 = vand.u32 %v481, 3
        %vm483 = vcmp.lt.s32.totalorder %v482, 2
        %vm484 = vcmp.eq.s32.totalorder %v482, 0
        %v485 = vxor.u32 %v479, 2147483648
        %v486 = vsel %vm484, %v478, %v485
        %vm487 = vcmp.eq.s32.totalorder %v482, 2
        %v488 = vxor.u32 %v478, 2147483648
        %v489 = vsel %vm487, %v488, %v479
        %v490 = vsel %vm483, %v486, %v489
        %v491 = vsel %vm480, nan, %v490
        %v493 = vlaneseq
        %v494 = vshrl.u32 %v493, 7
        %v495 = vsub.s32 0, %v494
        %v496 = vrot.slane %v387, %v495
        %v498 = vmul.f32 %v496, %v491
        %v499 = vadd.f32 %v386, %v498
        %v500 = vpack.c.bf16 %v499, %v499
        %v501 = vld [vmem:[%s5] sm:$0xf]
        %v502 = vld [vmem:[%s5 + $0x4] sm:$0xf]
        %v503 = vld [vmem:[%s5 + $0x8] sm:$0xf]
        %v504 = vld [vmem:[%s317] sm:$0xf]
        %v505 = vld [vmem:[%s6] sm:$0x3]
        %vm506 = vcmask 31744
        %v508 = vsel %vm506, %v504, 0
        %v511 = vsel %vm333, %v505, 0
        %513 = vmatprep.subr.bf16.mxu0 0
        %514 = vmatpush1.bf16.msra.mxu0 %v511
        %515 = vmatprep.subr.bf16.mxu0 0
        %516 = vmatpush1.bf16.msra.mxu0 0
        %517 = vmatprep.subr.bf16.mxu0 0
        %518 = vmatpush1.bf16.msra.mxu0 0
        %519 = vmatprep.subr.bf16.mxu0 0
        %520 = vmatpush1.bf16.msra.mxu0 0
        %521 = vmatprep.subr.bf16.mxu0 0
        %522 = vmatpush1.bf16.msra.mxu0 0
        %523 = vmatprep.subr.bf16.mxu0 0
        %524 = vmatpush1.bf16.msra.mxu0 0
        %525 = vmatprep.subr.bf16.mxu0 0
        %526 = vmatpush1.bf16.msra.mxu0 0
        %527 = vmatprep.subr.bf16.mxu0 0
        %528 = vmatpush1.bf16.msra.mxu0 0
        %529 = vmatprep.subr.bf16.mxu0 0
        %530 = vmatpush1.bf16.msra.mxu0 0
        %531 = vmatprep.subr.bf16.mxu0 0
        %532 = vmatpush1.bf16.msra.mxu0 0
        %533 = vmatprep.subr.bf16.mxu0 0
        %534 = vmatpush1.bf16.msra.mxu0 0
        %535 = vmatprep.subr.bf16.mxu0 0
        %536 = vmatpush1.bf16.msra.mxu0 0
        %537 = vmatprep.subr.bf16.mxu0 0
        %538 = vmatpush1.bf16.msra.mxu0 0
        %539 = vmatprep.subr.bf16.mxu0 0
        %540 = vmatpush1.bf16.msra.mxu0 0
        %541 = vmatprep.subr.bf16.mxu0 0
        %542 = vmatpush1.bf16.msra.mxu0 0
        %543 = vmatprep.subr.bf16.mxu0 0
        %544 = vmatpush1.bf16.msra.mxu0 0
        %545 = vmatprep.mubr.bf16.mxu0 0
        %546 = vmatmul.mubr.bf16.gmra.mrb[0].mxu0 %v508
        %v547 = vpop.f32.mrb[0].mxu0
        %v548 = vadd.f32 0.0, %v547
        %v549 = vpop.f32.mrb[0].mxu0
        %v550 = vpop.f32.mrb[0].mxu0
        %v551 = vpop.f32.mrb[0].mxu0
        %552 = vdwg.mxu0
        %v556 = vunpack.c.l.b16 %v501
        %v557 = vunpack.c.l.b16 %v502
        %v558 = vunpack.c.l.b16 %v503
        %v559 = vpack.c.b16 %v557, %v556
        %v560 = vpack.c.b16 %v558, %v558
        %vm562 = vcmask 195584
        %v564 = vsel %vm562, %v500, 0
        %vm566 = vcmask 1043456
        %v568 = vsel %vm566, %v560, 0
        %570 = vmatprep.subr.bf16.mxu0 0
        %571 = vmatpush1.bf16.msra.mxu0 %v559
        %572 = vmatprep.subr.bf16.mxu0 0
        %573 = vmatpush1.bf16.msra.mxu0 %v568
        %574 = vmatprep.subr.bf16.mxu0 0
        %575 = vmatpush1.bf16.msra.mxu0 0
        %576 = vmatprep.subr.bf16.mxu0 0
        %577 = vmatpush1.bf16.msra.mxu0 0
        %578 = vmatprep.subr.bf16.mxu0 0
        %579 = vmatpush1.bf16.msra.mxu0 0
        %580 = vmatprep.subr.bf16.mxu0 0
        %581 = vmatpush1.bf16.msra.mxu0 0
        %582 = vmatprep.subr.bf16.mxu0 0
        %583 = vmatpush1.bf16.msra.mxu0 0
        %584 = vmatprep.subr.bf16.mxu0 0
        %585 = vmatpush1.bf16.msra.mxu0 0
        %586 = vmatprep.subr.bf16.mxu0 0
        %587 = vmatpush1.bf16.msra.mxu0 0
        %588 = vmatprep.subr.bf16.mxu0 0
        %589 = vmatpush1.bf16.msra.mxu0 0
        %590 = vmatprep.subr.bf16.mxu0 0
        %591 = vmatpush1.bf16.msra.mxu0 0
        %592 = vmatprep.subr.bf16.mxu0 0
        %593 = vmatpush1.bf16.msra.mxu0 0
        %594 = vmatprep.subr.bf16.mxu0 0
        %595 = vmatpush1.bf16.msra.mxu0 0
        %596 = vmatprep.subr.bf16.mxu0 0
        %597 = vmatpush1.bf16.msra.mxu0 0
        %598 = vmatprep.subr.bf16.mxu0 0
        %599 = vmatpush1.bf16.msra.mxu0 0
        %600 = vmatprep.subr.bf16.mxu0 0
        %601 = vmatpush1.bf16.msra.mxu0 0
        %602 = vmatprep.mubr.bf16.mxu0 0
        %603 = vmatmul.mubr.bf16.gmra.mrb[0].mxu0 %v564
        %v604 = vpop.f32.mrb[0].mxu0
        %v605 = vadd.f32 %v548, %v604
        %v606 = vpop.f32.mrb[0].mxu0
        %v607 = vpop.f32.mrb[0].mxu0
        %v608 = vpop.f32.mrb[0].mxu0
        %609 = vdwg.mxu0
        %v610 = vld [vmem:[%s7] sm:$0x1]
        %v612 = vlaneseq
        %v613 = vshrl.u32 %v612, 7
        %v614 = vsub.s32 0, %v613
        %v615 = vrot.slane %v610, %v614
        %v617 = vadd.f32 %v605, %v615
        %v618 = vpack.c.bf16 %v617, %v617
        %vm619 = vcmask 257024
        %620 = vst.msk [vmem:[%s309] sm:$0xf] %vm619, %v618
        %s621 = sand.u32 %s208, 1
        %s622 = scalar_lea.sflag [#allocation3], %s621
        %s623 = sand.u32 %s208, 1
        %s624 = smul.addr %s623, 4
        %s625 = scalar_lea.vmem [#allocation2], %s624
        // Predicated region
        $region53: #{tpu_custom_call.1} parent=51 // pred_check
          %p626 = pneg %p218
        $region54: #{tpu_custom_call.1} parent=51 // pred_check_branch
          %628 = sbr.rel (%p626) target = $region56
        $region55: #{tpu_custom_call.1} parent=51 // pred_region
          %s630 = ssub.s32 64, 64
          %631 = vsyncadd %s622, %s630
          %s632 = smul.addr %s22, 64
          %s633 = scalar_lea.hbm %s8, %s632
          %s635 = sshll.u32 %s625, 4
          %s636 = int_to_ptr.vmem [resolvable:$true] %s635
          %638 = dma.vmem_to_hbm [thread:$0]  %s636, 64, %s633, %s622
        $region56: #{tpu_custom_call.1} parent=51 // pred_fallthru
          _
      $region52: #{tpu_custom_call.1} parent=5 // pred_fallthru
        _
      %p639 = scmp.le.s32.totalorder 2, %s17
      // Predicated region
      $region57: #{tpu_custom_call.1} parent=5 // pred_check
        %p640 = pneg %p639
      $region58: #{tpu_custom_call.1} parent=5 // pred_check_branch
        %642 = sbr.rel (%p640) target = $region60
      $region59: #{tpu_custom_call.1} parent=5 // pred_region
        %s643 = ssub.s32 %s17, 2
        // Predicated region
        $region61: #{tpu_custom_call.1} parent=59 // pred_check
          %p644 = pneg %p224
        $region62: #{tpu_custom_call.1} parent=59 // pred_check_branch
          %646 = sbr.rel (%p644) target = $region64
        $region63: #{tpu_custom_call.1} parent=59 // pred_region
          %s647 = sand.u32 %s209, 1
          %s648 = scalar_lea.sflag [#allocation3], %s647
          %s649 = sand.u32 %s209, 1
          %s650 = smul.addr %s649, 4
          %s651 = scalar_lea.vmem [#allocation2], %s650
          %652 = dma.done %s648, 64
        $region64: #{tpu_custom_call.1} parent=59 // pred_fallthru
          _
      $region60: #{tpu_custom_call.1} parent=5 // pred_fallthru
        _
    $region6: #{tpu_custom_call.1} parent=1 // loop_footer
      %s21 = sadd.s32 1, %s17
    $region7: #{tpu_custom_call.1} parent=1 // loop_footer_branch
      %16 = sbr.rel target = $region3
    $region8: #{tpu_custom_call.1} parent=1 // loop_exit
      _
    %653 = vsyncpa [#allocation3], 1
    %s654 = scalar_lea.sflag [#allocation3], 1
    %655 = vsyncpa %s654, 1

</llo_original>
